<compile_context>
chip_gen: v7x
topology: tpu7x:2x2x1
jax: 0.10.0
libtpu: 0.0.40
codegen_flags: <defaults>
</compile_context>

<pallas_src>
import numpy as np
import jax
import jax.numpy as jnp
from jax.experimental import pallas as pl
from jax.experimental.pallas import tpu as pltpu


# ----------------------------------------------------------------------------
# small helpers
# ----------------------------------------------------------------------------
def _apply_act(y, activation, alpha=None):
    """activation in {None, 'relu' (= ReLU6), 'hswish', 'prelu'} — traced inside kernels (f32)."""
    if activation is None:
        return y
    if activation == "relu":                      # nn.ReLU6
        return jnp.clip(y, 0.0, 6.0)
    if activation == "hswish":                    # x * relu6(x + 3) / 6
        return y * (jnp.clip(y + 3.0, 0.0, 6.0) * (1.0 / 6.0))
    if activation == "prelu":
        return jnp.where(y > 0, y, alpha * y)
    raise ValueError(f"unknown activation: {activation}")


def _cdiv(a, b):
    return -(-a // b)


def _choose_m_tile(m, bytes_per_col, n_batch, budget=6 << 20):
    """Lane-aligned (128-multiple) M tile sized by a VMEM budget (double-buffered in/out/res)."""
    if m <= 128:
        return m                                   # single full-extent block
    tm = min(m, max(budget // (2 * max(bytes_per_col, 1)), 128))
    tm = max(128, (tm // 128) * 128)
    # keep >= 2 parallel units of work so both v7x TensorCores stay busy
    if n_batch * _cdiv(m, tm) < 2:
        tm = max(128, ((_cdiv(m, 2) + 127) // 128) * 128)
    return tm


def _choose_c_block(c, m, n_batch, budget=6 << 20):
    """Channel block (multiple of 8, dividing C) sized so the DW working set stays small."""
    cands = [x for x in (64, 32, 16, 8) if c % x == 0]
    if not cands:
        return c
    per_c = m * 4 * 6                              # rough bytes/channel/step (blocks + f32 scratch)
    cb = next((x for x in cands if x * per_c <= budget), cands[-1])
    while n_batch * (c // cb) < 2:
        smaller = [x for x in cands if x < cb]
        if not smaller:
            break
        cb = smaller[0]
    return cb


def _fold_bn(w, bn, eps=1e-5):
    """Fold inference-mode BatchNorm into the preceding bias-free conv weight."""
    gamma, beta, mean, var = bn
    s = gamma / jnp.sqrt(var + eps)
    w_f = w * s.reshape((-1,) + (1,) * (w.ndim - 1))
    b_f = beta - mean * s
    return w_f, b_f


# ----------------------------------------------------------------------------
# 1x1 conv (+ folded BN + activation + optional SE gate + optional residual)
#   kernel computes y = W(Cout,Cin) @ x(Cin,TM)  — M is lane-dense, MXU in bf16.
# ----------------------------------------------------------------------------
def _make_pw_kernel(activation, has_gate, has_res, mxu_dtype):
    has_alpha = activation == "prelu"

    def kernel(*refs):
        x_ref, w_ref, b_ref = refs[0], refs[1], refs[2]
        i = 3
        a_ref = g_ref = r_ref = None
        if has_alpha:
            a_ref = refs[i]; i += 1
        if has_gate:
            g_ref = refs[i]; i += 1
        if has_res:
            r_ref = refs[i]; i += 1
        o_ref = refs[i]

        x = x_ref[0].astype(mxu_dtype)                       # (Cin, TM)
        w = w_ref[...]
        if has_gate:
            # fold the diagonal SE gate into the small (Cout, Cin) weight:
            # Cout*Cin VALU ops instead of Cin*TM.
            w = (w.astype(jnp.float32) * g_ref[0]).astype(mxu_dtype)
        y = jnp.dot(w, x, preferred_element_type=jnp.float32)   # MXU, f32 accumulate
        y = y + b_ref[...]                                   # folded BN bias (f32 epilogue)
        y = _apply_act(y, activation, a_ref[...] if has_alpha else None)
        if has_res:
            y = y + r_ref[0].astype(jnp.float32)             # fused residual add
        o_ref[0] = y.astype(o_ref.dtype)

    return kernel


def _pointwise_conv(x, w, b, activation, *, alpha=None, gate=None, residual=None,
                    out_dtype=None, mxu_dtype=jnp.float32):
    """x: (N, Cin, M), w: (Cout, Cin) [already in mxu_dtype], b/alpha: (Cout, 1) f32,
    gate: (N, 1, Cin) f32 | None, residual: (N, Cout, M) | None  ->  (N, Cout, M)."""
    n, cin, m = x.shape
    cout = w.shape[0]
    out_dtype = jnp.dtype(out_dtype if out_dtype is not None else x.dtype)
    has_gate = gate is not None
    has_res = residual is not None
    has_alpha = activation == "prelu"

    bytes_per_col = (cin * x.dtype.itemsize + cout * out_dtype.itemsize
                     + (cout * residual.dtype.itemsize if has_res else 0))
    tm = _choose_m_tile(m, bytes_per_col, n)
    grid = (n, _cdiv(m, tm))

    in_specs = [
        pl.BlockSpec((1, cin, tm), lambda i, j: (i, 0, j)),
        pl.BlockSpec((cout, cin), lambda i, j: (0, 0)),
        pl.BlockSpec((cout, 1), lambda i, j: (0, 0)),
    ]
    args = [x, w, b]
    if has_alpha:
        in_specs.append(pl.BlockSpec((cout, 1), lambda i, j: (0, 0)))
        args.append(alpha)
    if has_gate:
        in_specs.append(pl.BlockSpec((1, 1, cin), lambda i, j: (i, 0, 0)))
        args.append(gate)
    if has_res:
        in_specs.append(pl.BlockSpec((1, cout, tm), lambda i, j: (i, 0, j)))
        args.append(residual)

    return pl.pallas_call(
        _make_pw_kernel(activation, has_gate, has_res, mxu_dtype),
        out_shape=jax.ShapeDtypeStruct((n, cout, m), out_dtype),
        grid=grid,
        in_specs=in_specs,
        out_specs=pl.BlockSpec((1, cout, tm), lambda i, j: (i, 0, j)),
        compiler_params=pltpu.CompilerParams(
            dimension_semantics=("parallel", "parallel")),
    )(*args)


# ----------------------------------------------------------------------------
# depth-wise KxK conv (+ folded BN + activation), lane-dense (CB, H*W) layout.
#   * halo lives in a zero-padded VMEM scratch  -> no jnp.pad of the activation in HBM
#   * stride folded into the kernel             -> only the decimated output hits HBM
#   * per-channel sums (SE average pool) fused  -> optional second tiny output
# ----------------------------------------------------------------------------
def _make_dw_kernel(K, H, W, stride, activation, has_se):
    p = K // 2
    M = H * W
    Ho = (H - 1) // stride + 1
    Wo = (W - 1) // stride + 1
    PAD = p * W + p
    has_alpha = activation == "prelu"
    has_dsel = stride > 1

    def kernel(*refs):
        i = 0
        x_ref = refs[i]; i += 1
        w_ref = refs[i]; i += 1
        b_ref = refs[i]; i += 1
        m_ref = refs[i]; i += 1
        a_ref = d_ref = s_ref = None
        if has_alpha:
            a_ref = refs[i]; i += 1
        if has_dsel:
            d_ref = refs[i]; i += 1
        o_ref = refs[i]; i += 1
        if has_se:
            s_ref = refs[i]; i += 1
        xp_ref = refs[i]

        cb = x_ref.shape[1]
        # Stage the block into a flat, zero-padded f32 scratch: rows above/below the image
        # land in the zero halo; intra-row wrap of the flat shifts is killed by column masks.
        if PAD > 0:
            zeros = jnp.zeros((cb, PAD), jnp.float32)
            xp_ref[:, pl.ds(0, PAD)] = zeros
            xp_ref[:, pl.ds(PAD + M, PAD)] = zeros
        xp_ref[:, pl.ds(PAD, M)] = x_ref[0].astype(jnp.float32)

        acc = jnp.zeros((cb, M), jnp.float32)
        for dj in range(K):                       # group taps by column offset: one mask-mul per dj
            col = jnp.zeros((cb, M), jnp.float32)
            for di in range(K):
                shift = (di - p) * W + (dj - p)
                col = col + xp_ref[:, pl.ds(PAD + shift, M)] * w_ref[di * K + dj]
            acc = acc + col * m_ref[dj]
        acc = acc + b_ref[...]                    # folded BN bias
        y = _apply_act(acc, activation, a_ref[...] if has_alpha else None)

        if stride == 1:
            o_ref[0] = y.astype(o_ref.dtype)      # (CB, H*W) lane-dense store
            if has_se:
                s_ref[0] = jnp.sum(y, axis=1, keepdims=True)
        else:
            # Fold the stride: park the stride-1 field in the scratch and build the decimated
            # output in-kernel (per output row: contiguous read + tiny (W, Wo) selection matmul).
            # TODO(synk): skip computing the dropped rows/cols entirely (saves ~(s^2-1)/s^2 of the
            #             tap VPU work) and/or tile large spatial extents with a K-1 halo.
            xp_ref[:, pl.ds(PAD, M)] = y
            rows = []
            for io in range(Ho):
                r = xp_ref[:, pl.ds(PAD + io * stride * W, W)]           # (CB, W) contiguous
                rows.append(jnp.dot(r, d_ref[...],
                                    preferred_element_type=jnp.float32))  # (CB, Wo)
            yd = jnp.concatenate(rows, axis=1)                            # (CB, Ho*Wo)
            o_ref[0] = yd.astype(o_ref.dtype)
            if has_se:
                s_ref[0] = jnp.sum(yd, axis=1, keepdims=True)

    return kernel


def _depthwise_conv(x, H, W, w_k, b_k, activation, K, stride, *, alpha_k=None,
                    with_sums=False, out_dtype=None):
    """x: (N, C, H*W); w_k: (K*K, C, 1) folded; b_k/alpha_k: (C, 1).
    Returns (y: (N, C, Ho*Wo), sums: (N, C, 1) | None)."""
    n, c, m = x.shape
    assert m == H * W
    p = K // 2
    Ho = (H - 1) // stride + 1
    Wo = (W - 1) // stride + 1
    mo = Ho * Wo
    out_dtype = jnp.dtype(out_dtype if out_dtype is not None else x.dtype)
    cb = _choose_c_block(c, m, n)
    grid = (n, c // cb)

    # per-column-offset validity masks (kill intra-row wrap of the flat lane shifts)
    jcol = np.arange(m) % W
    masks = jnp.asarray(np.stack(
        [((jcol + (dj - p) >= 0) & (jcol + (dj - p) < W)).astype(np.float32)
         for dj in range(K)]))                                   # (K, H*W)

    in_specs = [
        pl.BlockSpec((1, cb, m), lambda i, j: (i, j, 0)),
        pl.BlockSpec((K * K, cb, 1), lambda i, j: (0, j, 0)),
        pl.BlockSpec((cb, 1), lambda i, j: (j, 0)),
        pl.BlockSpec((K, m), lambda i, j: (0, 0)),
    ]
    args = [x, w_k, b_k, masks]
    if activation == "prelu":
        in_specs.append(pl.BlockSpec((cb, 1), lambda i, j: (j, 0)))
        args.append(alpha_k)
    if stride > 1:
        dsel = np.zeros((W, Wo), np.float32)
        dsel[np.arange(Wo) * stride, np.arange(Wo)] = 1.0        # column-decimation selector
        in_specs.append(pl.BlockSpec((W, Wo), lambda i, j: (0, 0)))
        args.append(jnp.asarray(dsel))

    out_shape = jax.ShapeDtypeStruct((n, c, mo), out_dtype)
    out_specs = pl.BlockSpec((1, cb, mo), lambda i, j: (i, j, 0))
    if with_sums:
        out_shape = (out_shape, jax.ShapeDtypeStruct((n, c, 1), jnp.float32))
        out_specs = (out_specs, pl.BlockSpec((1, cb, 1), lambda i, j: (i, j, 0)))

    res = pl.pallas_call(
        _make_dw_kernel(K, H, W, stride, activation, with_sums),
        out_shape=out_shape,
        grid=grid,
        in_specs=in_specs,
        out_specs=out_specs,
        scratch_shapes=[pltpu.VMEM((cb, m + 2 * (p * W + p)), jnp.float32)],
        compiler_params=pltpu.CompilerParams(
            dimension_semantics=("parallel", "parallel")),
    )(*args)
    if with_sums:
        return res[0], res[1]
    return res, None


# ----------------------------------------------------------------------------
# IRBlock module (inference semantics; NCHW in/out)
# ----------------------------------------------------------------------------
def _bn_params(key, c):
    # "as-if-trained" BN statistics so the fold / bias paths are non-trivially checked.
    k1, k2, k3, k4 = jax.random.split(key, 4)
    gamma = jax.random.uniform(k1, (c,), minval=0.8, maxval=1.2, dtype=jnp.float32)
    beta = jax.random.uniform(k2, (c,), minval=-0.2, maxval=0.2, dtype=jnp.float32)
    mean = jax.random.uniform(k3, (c,), minval=-0.2, maxval=0.2, dtype=jnp.float32)
    var = jax.random.uniform(k4, (c,), minval=0.8, maxval=1.2, dtype=jnp.float32)
    return gamma, beta, mean, var


def _conv_init(key, shape, fan_in):
    # nn.Conv2d default: kaiming_uniform_(a=sqrt(5)) -> bound = 1/sqrt(fan_in)
    bound = 1.0 / (fan_in ** 0.5)
    return jax.random.uniform(key, shape, minval=-bound, maxval=bound, dtype=jnp.float32)


class IRBlockPallas:
    def __init__(self, in_channels, out_channels, kernel_size, stride, activation,
                 se, expansion_rate, bn_momentum=0.1, bn_track_running_stats=True,
                 point_group=1, *, compute_dtype=jnp.bfloat16, key=None):
        assert activation in ("hswish", "relu", "prelu", None)
        assert stride in (1, 2, 4)
        assert kernel_size % 2 == 1
        # TODO(synk): grouped point-wise conv (point_group > 1) not ported to the Pallas kernels.
        assert point_group == 1
        if key is None:
            key = jax.random.PRNGKey(0)

        self.in_channels = in_channels
        self.out_channels = out_channels
        self.kernel_size = kernel_size
        self.stride = stride
        self.activation = activation
        self.se = se
        self.expansion_rate = expansion_rate
        self.use_res_connect = (stride == 1) and (in_channels == out_channels)
        self.compute_dtype = jnp.dtype(compute_dtype)
        hid = int(in_channels * expansion_rate)
        self.hidden = hid
        K = kernel_size

        ks = jax.random.split(key, 10)
        self.pw_alpha = self.dw_alpha = None
        self.pw_alpha_k = self.dw_alpha_k = None
        if activation == "prelu":
            self.pw_alpha = jnp.full((hid,), 0.25, jnp.float32)
            self.dw_alpha = jnp.full((hid,), 0.25, jnp.float32)
            self.pw_alpha_k = self.pw_alpha.reshape(hid, 1)
            self.dw_alpha_k = self.dw_alpha.reshape(hid, 1)

        # point_wise (expansion): Conv2d(in, hid, 1) + BN + act
        if expansion_rate != 1:
            self.pw_w = _conv_init(ks[0], (hid, in_channels), fan_in=in_channels)
            self.pw_bn = _bn_params(ks[1], hid)
            pw_wf, pw_bf = _fold_bn(self.pw_w, self.pw_bn)
            self.pw_wq = pw_wf.astype(self.compute_dtype)          # bf16 MXU weight
            self.pw_bq = pw_bf.reshape(hid, 1)                     # f32 folded bias

        # depthwise: Conv2d(hid, hid, K, groups=hid) + BN + act
        self.dw_w = _conv_init(ks[2], (hid, K, K), fan_in=K * K)
        self.dw_bn = _bn_params(ks[3], hid)
        dw_wf, dw_bf = _fold_bn(self.dw_w, self.dw_bn)
        self.dw_wk = jnp.transpose(dw_wf.reshape(hid, K * K), (1, 0)).reshape(K * K, hid, 1)
        self.dw_bk = dw_bf.reshape(hid, 1)

        # point_wise_1 (projection): Conv2d(hid, out, 1) + BN (no activation)
        self.pw1_w = _conv_init(ks[4], (out_channels, hid), fan_in=hid)
        self.pw1_bn = _bn_params(ks[5], out_channels)
        pw1_wf, pw1_bf = _fold_bn(self.pw1_w, self.pw1_bn)
        self.pw1_wq = pw1_wf.astype(self.compute_dtype)
        self.pw1_bq = pw1_bf.reshape(out_channels, 1)

        # SE module
        if se:
            cr = hid // 4
            self.se_sq_w = _conv_init(ks[6], (cr, hid), fan_in=hid)
            self.se_sq_b = _conv_init(ks[7], (cr,), fan_in=hid)
            self.se_ex_w = _conv_init(ks[8], (hid, cr), fan_in=cr)
            self.se_ex_b = _conv_init(ks[9], (hid,), fan_in=cr)
            self.se_sq_wt = jnp.transpose(self.se_sq_w, (1, 0))     # (hid, cr)
            self.se_ex_wt = jnp.transpose(self.se_ex_w, (1, 0))     # (cr, hid)

    # --- Pallas forward ------------------------------------------------------
    def __call__(self, x):
        n, c, h, w = x.shape
        assert c == self.in_channels
        x_flat = x.reshape(n, c, h * w)            # NCHW -> (N, C, M): free reshape, M lane-dense

        # 1) point-wise expansion (1x1 conv + folded BN + act), bf16 MXU / bf16 inter-stage
        if self.expansion_rate != 1:
            y = _pointwise_conv(x_flat, self.pw_wq, self.pw_bq, self.activation,
                                alpha=self.pw_alpha_k,
                                out_dtype=self.compute_dtype, mxu_dtype=self.compute_dtype)
        else:
            y = x_flat

        # 2) depth-wise conv + folded BN + act (stride + SE channel sums fused in-kernel)
        y_dw, ch_sum = _depthwise_conv(
            y, h, w, self.dw_wk, self.dw_bk, self.activation, self.kernel_size, self.stride,
            alpha_k=self.dw_alpha_k, with_sums=self.se, out_dtype=self.compute_dtype)
        ho = (h - 1) // self.stride + 1
        wo = (w - 1) // self.stride + 1

        # 3) squeeze-excite gate: tiny (N, C) MLP -> plain JAX (a kernel dispatch here only
        #    adds launch/pipeline-drain overhead; the matmul massively underfills the MXU).
        gate = None
        if self.se:
            pooled = ch_sum[:, :, 0] * (1.0 / float(ho * wo))
            s = jnp.maximum(pooled @ self.se_sq_wt + self.se_sq_b, 0.0)
            e = s @ self.se_ex_wt + self.se_ex_b
            gate = (jnp.clip(e + 3.0, 0.0, 6.0) * (1.0 / 6.0)).reshape(n, 1, self.hidden)

        # 4) point-wise projection (1x1 conv + folded BN); SE gate folded into W, residual fused
        residual = x_flat if self.use_res_connect else None
        out = _pointwise_conv(y_dw, self.pw1_wq, self.pw1_bq, None,
                              gate=gate, residual=residual,
                              out_dtype=jnp.float32, mxu_dtype=self.compute_dtype)
        return out.reshape(n, self.out_channels, ho, wo)

    # --- pure-JAX reference (raw, unfolded parameters, f32) -------------------
    def reference(self, x):
        hp = jax.lax.Precision.HIGHEST
        eps = 1e-5

        def bn(y, params):
            gamma, beta, mean, var = params
            return ((y - mean[None, :, None, None])
                    / jnp.sqrt(var[None, :, None, None] + eps)
                    * gamma[None, :, None, None] + beta[None, :, None, None])

        def act(y, name, alpha=None):
            if name is None:
                return y
            if name == "relu":
                return jnp.clip(y, 0.0, 6.0)
            if name == "hswish":
                return y * jnp.clip(y + 3.0, 0.0, 6.0) / 6.0
            return jnp.where(y > 0, y, alpha[None, :, None, None] * y)

        y = x
        if self.expansion_rate != 1:
            y = jnp.einsum("oc,nchw->nohw", self.pw_w, y, precision=hp)
            y = act(bn(y, self.pw_bn), self.activation, self.pw_alpha)
        K, s, p = self.kernel_size, self.stride, self.kernel_size // 2
        y = jax.lax.conv_general_dilated(
            y, self.dw_w.reshape(self.hidden, 1, K, K),
            window_strides=(s, s), padding=[(p, p), (p, p)],
            dimension_numbers=("NCHW", "OIHW", "NCHW"),
            feature_group_count=self.hidden, precision=hp)
        y = act(bn(y, self.dw_bn), self.activation, self.dw_alpha)
        if self.se:
            pooled = jnp.mean(y, axis=(2, 3))
            sq = jnp.maximum(jnp.einsum("nc,rc->nr", pooled, self.se_sq_w, precision=hp)
                             + self.se_sq_b, 0.0)
            ex = jnp.einsum("nr,cr->nc", sq, self.se_ex_w, precision=hp) + self.se_ex_b
            gate = jnp.clip(ex + 3.0, 0.0, 6.0) / 6.0
            y = y * gate[:, :, None, None]
        y = jnp.einsum("oc,nchw->nohw", self.pw1_w, y, precision=hp)
        y = bn(y, self.pw1_bn)
        if self.use_res_connect:
            y = y + x
        return y


# ----------------------------------------------------------------------------
# demo / self-check
# ----------------------------------------------------------------------------
if __name__ == "__main__":
    root = jax.random.PRNGKey(0)
    kx, k1, k2 = jax.random.split(root, 3)

    N, C, H, W = 2, 16, 16, 16
    x = jax.random.normal(kx, (N, C, H, W), dtype=jnp.float32)

    # Config A: expansion + SE + h-swish + residual (stride 1, Cin == Cout), bf16 MXU path.
    blk_a = IRBlockPallas(in_channels=C, out_channels=C, kernel_size=3, stride=1,
                          activation="hswish", se=True, expansion_rate=4,
                          bn_momentum=0.1, bn_track_running_stats=True,
                          point_group=1, compute_dtype=jnp.bfloat16, key=k1)
    y_a = jax.block_until_ready(blk_a(x))
    r_a = jax.block_until_ready(blk_a.reference(x))
    assert y_a.shape == (N, C, H, W)
    err_a = float(jnp.max(jnp.abs(y_a - r_a)))
    rel_a = err_a / (float(jnp.max(jnp.abs(r_a))) + 1e-6)
    assert rel_a < 3e-2, f"config A mismatch: max abs err = {err_a}, rel = {rel_a}"

    # Config B: no expansion, no SE, ReLU6, stride 2, Cout != Cin (no residual), f32 (tight check).
    blk_b = IRBlockPallas(in_channels=C, out_channels=24, kernel_size=3, stride=2,
                          activation="relu", se=False, expansion_rate=1,
                          bn_momentum=0.1, bn_track_running_stats=True,
                          point_group=1, compute_dtype=jnp.float32, key=k2)
    y_b = jax.block_until_ready(blk_b(x))
    r_b = jax.block_until_ready(blk_b.reference(x))
    assert y_b.shape == (N, 24, H // 2, W // 2)
    err_b = float(jnp.max(jnp.abs(y_b - r_b)))
    assert err_b < 2e-3, f"config B mismatch: max abs err = {err_b}"

    print("KERNEL_OK")
</pallas_src>

<mosaic_0001>
module attributes {stable_mosaic.version = 11 : i64} {
  func.func @kernel(%arg0: i32, %arg1: i32, %arg2: memref<1x16x256xf32, #tpu.memory_space<vmem>>, %arg3: memref<64x16xbf16, #tpu.memory_space<vmem>>, %arg4: memref<64x1xf32, #tpu.memory_space<vmem>>, %arg5: memref<1x64x256xbf16, #tpu.memory_space<vmem>>) attributes {dimension_semantics = [#tpu.dimension_semantics<parallel>, #tpu.dimension_semantics<parallel>], iteration_bounds = array<i64: 2, 1>, scalar_prefetch = 0 : i64, scratch_operands = 0 : i64, tpu.core_type = #tpu.core_type<tc>, window_params = [{transform_indices = @transform_0, window_bounds = array<i64: 1, 16, 256>}, {pipeline_mode = #tpu.pipeline_mode<synchronous>, transform_indices = @transform_1, window_bounds = array<i64: 64, 16>}, {pipeline_mode = #tpu.pipeline_mode<synchronous>, transform_indices = @transform_2, window_bounds = array<i64: 64, 1>}, {transform_indices = @transform_3, window_bounds = array<i64: 1, 64, 256>}]} {
    %c0 = arith.constant 0 : index
    %c0_0 = arith.constant 0 : index
    %c0_1 = arith.constant 0 : index
    %0 = vector.load %arg2[%c0, %c0_0, %c0_1] : memref<1x16x256xf32, #tpu.memory_space<vmem>>, vector<1x16x256xf32>
    %1 = vector.shape_cast %0 : vector<1x16x256xf32> to vector<16x256xf32>
    %2 = arith.truncf %1 : vector<16x256xf32> to vector<16x256xbf16>
    %c0_2 = arith.constant 0 : index
    %c0_3 = arith.constant 0 : index
    %3 = vector.load %arg3[%c0_2, %c0_3] : memref<64x16xbf16, #tpu.memory_space<vmem>>, vector<64x16xbf16>
    %cst = arith.constant dense<0.000000e+00> : vector<64x256xf32>
    %4 = tpu.matmul %3, %2, %cst {dimension_numbers = #tpu.dot_dimension_numbers<[1], [0], [0], [1], [0, 0, 1, 1], [], []>} : vector<64x16xbf16>, vector<16x256xbf16>, vector<64x256xf32> -> vector<64x256xf32>
    %c0_4 = arith.constant 0 : index
    %c0_5 = arith.constant 0 : index
    %5 = vector.load %arg4[%c0_4, %c0_5] : memref<64x1xf32, #tpu.memory_space<vmem>>, vector<64x1xf32>
    %6 = vector.broadcast %5 : vector<64x1xf32> to vector<64x256xf32>
    %7 = arith.addf %4, %6 : vector<64x256xf32>
    %cst_6 = arith.constant 3.000000e+00 : f32
    %8 = vector.broadcast %cst_6 : f32 to vector<64x256xf32>
    %9 = arith.addf %7, %8 : vector<64x256xf32>
    %cst_7 = arith.constant 0.000000e+00 : f32
    %cst_8 = arith.constant 6.000000e+00 : f32
    %10 = vector.broadcast %cst_7 : f32 to vector<64x256xf32>
    %11 = arith.maximumf %10, %9 : vector<64x256xf32>
    %12 = vector.broadcast %cst_8 : f32 to vector<64x256xf32>
    %13 = arith.minimumf %12, %11 : vector<64x256xf32>
    %cst_9 = arith.constant 0.166666672 : f32
    %14 = vector.broadcast %cst_9 : f32 to vector<64x256xf32>
    %15 = arith.mulf %13, %14 : vector<64x256xf32>
    %16 = arith.mulf %7, %15 : vector<64x256xf32>
    %17 = arith.truncf %16 : vector<64x256xf32> to vector<64x256xbf16>
    %c0_10 = arith.constant 0 : index
    %c0_11 = arith.constant 0 : index
    %c0_12 = arith.constant 0 : index
    %18 = vector.load %arg5[%c0_10, %c0_11, %c0_12] : memref<1x64x256xbf16, #tpu.memory_space<vmem>>, vector<1x64x256xbf16>
    %19 = vector.shape_cast %18 : vector<1x64x256xbf16> to vector<64x256xbf16>
    %20 = vector.shape_cast %17 : vector<64x256xbf16> to vector<1x64x256xbf16>
    tpu.vector_store %arg5[%c0_10, %c0_11, %c0_12], %20 {strides = array<i32>} : memref<1x64x256xbf16, #tpu.memory_space<vmem>>, vector<1x64x256xbf16>,
    return
  }
  func.func @transform_0(%arg0: i32, %arg1: i32) -> (i32, i32, i32) {
    %c0_i32 = arith.constant 0 : i32
    %c0_i32_0 = arith.constant 0 : i32
    return %arg0, %c0_i32, %arg1 : i32, i32, i32
  }
  func.func @transform_1(%arg0: i32, %arg1: i32) -> (i32, i32) {
    %c0_i32 = arith.constant 0 : i32
    %c0_i32_0 = arith.constant 0 : i32
    %c0_i32_1 = arith.constant 0 : i32
    return %c0_i32, %c0_i32_0 : i32, i32
  }
  func.func @transform_2(%arg0: i32, %arg1: i32) -> (i32, i32) {
    %c0_i32 = arith.constant 0 : i32
    %c0_i32_0 = arith.constant 0 : i32
    %c0_i32_1 = arith.constant 0 : i32
    return %c0_i32, %c0_i32_0 : i32, i32
  }
  func.func @transform_3(%arg0: i32, %arg1: i32) -> (i32, i32, i32) {
    %c0_i32 = arith.constant 0 : i32
    %c0_i32_0 = arith.constant 0 : i32
    return %arg0, %c0_i32, %arg1 : i32, i32, i32
  }
}

</mosaic_0001>

<llo_original>
// kernel: tpu_custom_call.1
$region0: #{tpu_custom_call.1}
  #allocation0 [shape = 'u32[]', space=smem, size = 0x4, offset = 0x4, fixed_abs, tag = 'smem constant byte address 0x4 - core index']
  #allocation1 [shape = 'u32[144,128]{1,0:T(1,128)}', space=vmem, size = 0x12000, scoped, tag = 'internal scratch']
  %s0 = inlined_call_operand.vmem [shape: f32[2,16,256], index: 0, kind: input, shape index: {}]
  %s1 = inlined_call_operand.vmem [shape: bf16[64,16], index: 1, kind: input, shape index: {}]
  %s2 = inlined_call_operand.vmem [shape: f32[64,1], index: 2, kind: input, shape index: {}]
  %s3 = inlined_call_operand.hbm [shape: bf16[2,64,256], index: 3, kind: output, shape index: {}]
  %s4 = sld [smem:[#allocation0]]
  $region45: #{tpu_custom_call.1} parent=0
    _
  %s6 = ssub.s32 1, %s4
  %s7 = scalar_select 0, %s6, %s4
  $region1: #{tpu_custom_call.1} parent=0
    #allocation2 [shape = 'u8[65536]{0}', space=vmem, size = 0x10000, scoped, tag = 'output window, operand 0']
    #allocation3 [shape = 's32[2]{0}', space=sflag, size = 0x8, scoped, tag = 'scoped memory for tpu_custom_call.1']
    %8 = vsyncpa [#allocation3], 0
    %s9 = scalar_lea.sflag [#allocation3], 1
    %10 = vsyncpa %s9, 0
    loop: start=0, step=1, limit=4
    $region2: #{tpu_custom_call.1} parent=1 // loop_pre_header
      _
    $region3: #{tpu_custom_call.1} parent=1 // loop_header
      %s12 = sphi 0, %s16
      %p13 = scmp.ge.s32.totalorder %s12, 4
      %s19 = sphi 0, %s31
      %s20 = sphi 0, %s27
      %s21 = sphi 0, %s19
      %s22 = sphi 0, %s20
      %s23 = sphi 0, %s21
      %s24 = sphi 0, %s22
      %s36 = sphi 0, %s38
      %s39 = sphi 0, %s36
      %s40 = sphi 0, %s39
      %s56 = sphi 0, %s40
      %s60 = sphi 0, %s60
      %s62 = sphi 0, %s60
      %s63 = sphi 0, %s62
      %s77 = sphi 0, %s63
      %s81 = sphi 0, %s81
      %s83 = sphi 0, %s81
      %s84 = sphi 0, %s83
      %s98 = sphi 0, %s84
      %s106 = sphi 0, %s108
      %s109 = sphi 0, %s106
      %s110 = sphi 0, %s109
      %s126 = sphi 0, %s110
    $region4: #{tpu_custom_call.1} parent=1 // loop_header_branch
      %15 = sbr.rel (%p13) target = $region8
    $region5: #{tpu_custom_call.1} parent=1 // loop_body
      %s17 = ssub.s32 %s12, 1
      %s18 = ssub.s32 %s12, 2
      %s25 = sadd.s32 1, %s20
      %p26 = scmp.ge.s32.totalorder %s25, 1
      %s27 = scalar_select %p26, 0, %s25
      %s28 = sadd.s32 1, %s19
      %s29 = scalar_select %p26, %s28, %s19
      %p30 = scmp.ge.s32.totalorder %s29, 2
      %s31 = scalar_select %p30, 0, %s29
      %s32 = ssub.s32 %s19, %s31
      %s33 = ssub.s32 %s20, %s27
      %s34 = sor.u32 %s32, %s33
      %p35 = scmp.eq.s32.totalorder %s34, 0
      %s37 = sadd.s32 %s36, 1
      %s38 = scalar_select %p35, %s36, %s37
      %p41 = pneg %p35
      %p42 = scmp.eq.s32.totalorder %s12, 1
      %p43 = por %p41, %p42
      %p44 = scmp.ne.s32.totalorder %s36, %s39
      %p45 = scmp.eq.s32.totalorder %s12, 0
      %p46 = por %p44, %p45
      %p47 = scmp.ne.s32.totalorder %s36, %s39
      %p48 = scmp.eq.s32.totalorder %s17, 1
      %p49 = por %p47, %p48
      %p50 = scmp.ne.s32.totalorder %s39, %s40
      %p51 = scmp.eq.s32.totalorder %s17, 0
      %p52 = por %p50, %p51
      %p53 = scmp.ne.s32.totalorder %s39, %s40
      %p54 = scmp.eq.s32.totalorder %s18, 1
      %p55 = por %p53, %p54
      %p57 = scmp.ne.s32.totalorder %s40, %s56
      %p58 = scmp.eq.s32.totalorder %s18, 0
      %p59 = por %p57, %p58
      %s61 = sadd.s32 %s60, 1
      %p64 = scmp.eq.s32.totalorder %s12, 1
      %p65 = scmp.ne.s32.totalorder %s60, %s62
      %p66 = scmp.eq.s32.totalorder %s12, 0
      %p67 = por %p65, %p66
      %p68 = scmp.ne.s32.totalorder %s60, %s62
      %p69 = scmp.eq.s32.totalorder %s17, 1
      %p70 = por %p68, %p69
      %p71 = scmp.ne.s32.totalorder %s62, %s63
      %p72 = scmp.eq.s32.totalorder %s17, 0
      %p73 = por %p71, %p72
      %p74 = scmp.ne.s32.totalorder %s62, %s63
      %p75 = scmp.eq.s32.totalorder %s18, 1
      %p76 = por %p74, %p75
      %p78 = scmp.ne.s32.totalorder %s63, %s77
      %p79 = scmp.eq.s32.totalorder %s18, 0
      %p80 = por %p78, %p79
      %s82 = sadd.s32 %s81, 1
      %p85 = scmp.eq.s32.totalorder %s12, 1
      %p86 = scmp.ne.s32.totalorder %s81, %s83
      %p87 = scmp.eq.s32.totalorder %s12, 0
      %p88 = por %p86, %p87
      %p89 = scmp.ne.s32.totalorder %s81, %s83
      %p90 = scmp.eq.s32.totalorder %s17, 1
      %p91 = por %p89, %p90
      %p92 = scmp.ne.s32.totalorder %s83, %s84
      %p93 = scmp.eq.s32.totalorder %s17, 0
      %p94 = por %p92, %p93
      %p95 = scmp.ne.s32.totalorder %s83, %s84
      %p96 = scmp.eq.s32.totalorder %s18, 1
      %p97 = por %p95, %p96
      %p99 = scmp.ne.s32.totalorder %s84, %s98
      %p100 = scmp.eq.s32.totalorder %s18, 0
      %p101 = por %p99, %p100
      %s102 = ssub.s32 %s19, %s31
      %s103 = ssub.s32 %s20, %s27
      %s104 = sor.u32 %s102, %s103
      %p105 = scmp.eq.s32.totalorder %s104, 0
      %s107 = sadd.s32 %s106, 1
      %s108 = scalar_select %p105, %s106, %s107
      %p111 = pneg %p105
      %p112 = scmp.eq.s32.totalorder %s12, 1
      %p113 = por %p111, %p112
      %p114 = scmp.ne.s32.totalorder %s106, %s109
      %p115 = scmp.eq.s32.totalorder %s12, 0
      %p116 = por %p114, %p115
      %p117 = scmp.ne.s32.totalorder %s106, %s109
      %p118 = scmp.eq.s32.totalorder %s17, 1
      %p119 = por %p117, %p118
      %p120 = scmp.ne.s32.totalorder %s109, %s110
      %p121 = scmp.eq.s32.totalorder %s17, 0
      %p122 = por %p120, %p121
      %p123 = scmp.ne.s32.totalorder %s109, %s110
      %p124 = scmp.eq.s32.totalorder %s18, 1
      %p125 = por %p123, %p124
      %p127 = scmp.ne.s32.totalorder %s110, %s126
      %p128 = scmp.eq.s32.totalorder %s18, 0
      %p129 = por %p127, %p128
      %p130 = scmp.le.s32.totalorder 1, %s12
      %p131 = scmp.lt.s32.totalorder %s12, 3
      %p132 = pnand %p130, %p131
      %p133 = pneg %p132
      // Predicated region
      $region9: #{tpu_custom_call.1} parent=5 // pred_check
        _
      $region10: #{tpu_custom_call.1} parent=5 // pred_check_branch
        %135 = sbr.rel (%p132) target = $region12
      $region11: #{tpu_custom_call.1} parent=5 // pred_region
        %s136 = ssub.s32 %s12, 1
        // Predicated region
        $region13: #{tpu_custom_call.1} parent=11 // pred_check
          %p137 = pneg %p73
        $region14: #{tpu_custom_call.1} parent=11 // pred_check_branch
          %139 = sbr.rel (%p137) target = $region16
        $region15: #{tpu_custom_call.1} parent=11 // pred_region
          _
        $region16: #{tpu_custom_call.1} parent=11 // pred_fallthru
          _
        // Predicated region
        $region17: #{tpu_custom_call.1} parent=11 // pred_check
          %p140 = pneg %p94
        $region18: #{tpu_custom_call.1} parent=11 // pred_check_branch
          %142 = sbr.rel (%p140) target = $region20
        $region19: #{tpu_custom_call.1} parent=11 // pred_region
          _
        $region20: #{tpu_custom_call.1} parent=11 // pred_fallthru
          _
      $region12: #{tpu_custom_call.1} parent=5 // pred_fallthru
        _
      %p143 = scmp.lt.s32.totalorder %s12, 2
      // Predicated region
      $region21: #{tpu_custom_call.1} parent=5 // pred_check
        %p144 = pneg %p143
      $region22: #{tpu_custom_call.1} parent=5 // pred_check_branch
        %146 = sbr.rel (%p144) target = $region24
      $region23: #{tpu_custom_call.1} parent=5 // pred_region
        // Predicated region
        $region25: #{tpu_custom_call.1} parent=23 // pred_check
          %p147 = pneg %p46
        $region26: #{tpu_custom_call.1} parent=23 // pred_check_branch
          %149 = sbr.rel (%p147) target = $region28
        $region27: #{tpu_custom_call.1} parent=23 // pred_region
          %s150 = smul.u32 2, %s20
          %p151 = scmp.lt.s32.totalorder %s19, 1
          %s152 = scalar_select %p151, %s19, 1
          %p153 = scmp.lt.s32.totalorder %s150, 1
          %s154 = scalar_select %p153, %s150, 1
          %s155 = smul.addr %s152, 4
          %s156 = sadd.s32 %s154, %s155
          %s157 = smul.addr %s156, 8
          %s158 = scalar_lea.vmem %s0, %s157
          %s159 = smul.u32 2, %s20
        $region28: #{tpu_custom_call.1} parent=23 // pred_fallthru
          _
      $region24: #{tpu_custom_call.1} parent=5 // pred_fallthru
        _
      %p160 = scmp.le.s32.totalorder 1, %s12
      %p161 = scmp.lt.s32.totalorder %s12, 3
      %p162 = pnand %p160, %p161
      %p163 = pneg %p162
      // Predicated region
      $region29: #{tpu_custom_call.1} parent=5 // pred_check
        _
      $region30: #{tpu_custom_call.1} parent=5 // pred_check_branch
        %165 = sbr.rel (%p162) target = $region32
      $region31: #{tpu_custom_call.1} parent=5 // pred_region
        %s166 = ssub.s32 %s12, 1
        %s167 = smul.u32 2, %s22
        %p168 = scmp.lt.s32.totalorder %s21, 1
        %s169 = scalar_select %p168, %s21, 1
        %p170 = scmp.lt.s32.totalorder %s167, 1
        %s171 = scalar_select %p170, %s167, 1
        %s172 = smul.addr %s169, 4
        %s173 = sadd.s32 %s171, %s172
        %s174 = smul.addr %s173, 8
        %s175 = scalar_lea.vmem %s0, %s174
        %p176 = pneg %p52
        %p177 = pneg %p49
        %p178 = pneg %p73
        %p179 = pneg %p70
        %p180 = pneg %p94
        %p181 = pneg %p91
        %p182 = pneg %p122
        %p183 = pneg %p119
        %s184 = sand.u32 %s109, 1
        %s185 = scalar_lea.sflag [#allocation3], %s184
        %s186 = sand.u32 %s109, 1
        %s187 = smul.addr %s186, 64
        %s188 = scalar_lea.vmem [#allocation2], %s187
        %s189 = smul.u32 2, %s22
        %p190 = scmp.lt.s32.totalorder %s21, 1
        %s191 = scalar_select %p190, %s21, 1
        %p192 = scmp.lt.s32.totalorder %s189, 1
        %s193 = scalar_select %p192, %s189, 1
        %s194 = smul.addr %s191, 4
        %s195 = sadd.s32 %s193, %s194
        %s196 = smul.addr %s195, 8
        %s197 = scalar_lea.vmem %s0, %s196
        %s198 = smul.u32 2, %s22
        %s199 = smul.u32 2, %s22
        %v201 = vld [vmem:[%s197] sm:$0xff]
        %v202 = vld [vmem:[%s197 + $0x8] sm:$0xff]
        %v203 = vld [vmem:[%s197 + $0x10] sm:$0xff]
        %v204 = vld [vmem:[%s197 + $0x18] sm:$0xff]
        %v205 = vpack.c.bf16 %v203, %v201
        %v206 = vpack.c.bf16 %v204, %v202
        %v207 = vld [vmem:[%s1] sm:$0xf]
        %v208 = vld [vmem:[%s1 + $0x4] sm:$0xf]
        %v209 = vld [vmem:[%s1 + $0x8] sm:$0xf]
        %v210 = vld [vmem:[%s1 + $0xc] sm:$0xf]
        %v211 = vld [vmem:[%s1 + $0x10] sm:$0xf]
        %v212 = vld [vmem:[%s1 + $0x14] sm:$0xf]
        %v213 = vld [vmem:[%s1 + $0x18] sm:$0xf]
        %v214 = vld [vmem:[%s1 + $0x1c] sm:$0xf]
        %v215 = vld [vmem:[%s2] sm:$0xff]
        %v216 = vld [vmem:[%s2 + $0x8] sm:$0xff]
        %v217 = vld [vmem:[%s2 + $0x10] sm:$0xff]
        %v218 = vld [vmem:[%s2 + $0x18] sm:$0xff]
        %v219 = vld [vmem:[%s2 + $0x20] sm:$0xff]
        %v220 = vld [vmem:[%s2 + $0x28] sm:$0xff]
        %v221 = vld [vmem:[%s2 + $0x30] sm:$0xff]
        %v222 = vld [vmem:[%s2 + $0x38] sm:$0xff]
        %224 = vset.pattern.permute.xlu0 0
        %225 = vperm.xlu0 %224, %v215
        %v226 = vpop.permute.xlu0 %225
        %229 = vset.pattern.permute.xlu0 0
        %230 = vperm.xlu0 %229, %v216
        %v231 = vpop.permute.xlu0 %230
        %234 = vset.pattern.permute.xlu0 0
        %235 = vperm.xlu0 %234, %v217
        %v236 = vpop.permute.xlu0 %235
        %239 = vset.pattern.permute.xlu0 0
        %240 = vperm.xlu0 %239, %v218
        %v241 = vpop.permute.xlu0 %240
        %244 = vset.pattern.permute.xlu0 0
        %245 = vperm.xlu0 %244, %v219
        %v246 = vpop.permute.xlu0 %245
        %249 = vset.pattern.permute.xlu0 0
        %250 = vperm.xlu0 %249, %v220
        %v251 = vpop.permute.xlu0 %250
        %254 = vset.pattern.permute.xlu0 0
        %255 = vperm.xlu0 %254, %v221
        %v256 = vpop.permute.xlu0 %255
        %259 = vset.pattern.permute.xlu0 0
        %260 = vperm.xlu0 %259, %v222
        %v261 = vpop.permute.xlu0 %260
        %v271 = vunpack.c.l.b16 %v207
        %v272 = vunpack.c.l.b16 %v208
        %v273 = vunpack.c.l.b16 %v209
        %v274 = vunpack.c.l.b16 %v210
        %v275 = vunpack.c.l.b16 %v211
        %v276 = vunpack.c.l.b16 %v212
        %v277 = vunpack.c.l.b16 %v213
        %v278 = vunpack.c.l.b16 %v214
        %v279 = vpack.c.b16 %v272, %v271
        %v280 = vpack.c.b16 %v274, %v273
        %v281 = vpack.c.b16 %v276, %v275
        %v282 = vpack.c.b16 %v278, %v277
        %vm283 = vcmask 130048
        %v285 = vsel %vm283, %v279, 0
        %v288 = vsel %vm283, %v280, 0
        %v291 = vsel %vm283, %v281, 0
        %v294 = vsel %vm283, %v282, 0
        %296 = vmatprep.subr.bf16.mxu0 %v206
        %297 = vmatpush1.bf16.msra.mxu0 %v205
        %298 = vmatprep.subr.bf16.mxu0 0
        %299 = vmatpush1.bf16.msra.mxu0 0
        %300 = vmatprep.subr.bf16.mxu0 0
        %301 = vmatpush1.bf16.msra.mxu0 0
        %302 = vmatprep.subr.bf16.mxu0 0
        %303 = vmatpush1.bf16.msra.mxu0 0
        %304 = vmatprep.subr.bf16.mxu0 0
        %305 = vmatpush1.bf16.msra.mxu0 0
        %306 = vmatprep.subr.bf16.mxu0 0
        %307 = vmatpush1.bf16.msra.mxu0 0
        %308 = vmatprep.subr.bf16.mxu0 0
        %309 = vmatpush1.bf16.msra.mxu0 0
        %310 = vmatprep.subr.bf16.mxu0 0
        %311 = vmatpush1.bf16.msra.mxu0 0
        %312 = vmatprep.subr.bf16.mxu0 0
        %313 = vmatpush1.bf16.msra.mxu0 0
        %314 = vmatprep.subr.bf16.mxu0 0
        %315 = vmatpush1.bf16.msra.mxu0 0
        %316 = vmatprep.subr.bf16.mxu0 0
        %317 = vmatpush1.bf16.msra.mxu0 0
        %318 = vmatprep.subr.bf16.mxu0 0
        %319 = vmatpush1.bf16.msra.mxu0 0
        %320 = vmatprep.subr.bf16.mxu0 0
        %321 = vmatpush1.bf16.msra.mxu0 0
        %322 = vmatprep.subr.bf16.mxu0 0
        %323 = vmatpush1.bf16.msra.mxu0 0
        %324 = vmatprep.subr.bf16.mxu0 0
        %325 = vmatpush1.bf16.msra.mxu0 0
        %326 = vmatprep.subr.bf16.mxu0 0
        %327 = vmatpush1.bf16.msra.mxu0 0
        %328 = vmatprep.mubr.bf16.mxu0 0
        %329 = vmatmul.mubr.bf16.gmra.mrb[0].mxu0 %v285
        %v330 = vpop.f32.mrb[0].mxu0
        %v331 = vadd.f32 %v226, %v330
        %v332 = vpop.f32.mrb[0].mxu0
        %v333 = vadd.f32 %v226, %v332
        %v334 = vpop.f32.mrb[0].mxu0
        %v335 = vadd.f32 %v231, %v334
        %v336 = vpop.f32.mrb[0].mxu0
        %v337 = vadd.f32 %v231, %v336
        %338 = vmatprep.mubr.bf16.mxu0 0
        %339 = vmatmul.mubr.bf16.gmra.mrb[0].mxu0 %v288
        %v340 = vpop.f32.mrb[0].mxu0
        %v341 = vadd.f32 %v236, %v340
        %v342 = vpop.f32.mrb[0].mxu0
        %v343 = vadd.f32 %v236, %v342
        %v344 = vpop.f32.mrb[0].mxu0
        %v345 = vadd.f32 %v241, %v344
        %v346 = vpop.f32.mrb[0].mxu0
        %v347 = vadd.f32 %v241, %v346
        %348 = vmatprep.mubr.bf16.mxu0 0
        %349 = vmatmul.mubr.bf16.gmra.mrb[0].mxu0 %v291
        %v350 = vpop.f32.mrb[0].mxu0
        %v351 = vadd.f32 %v246, %v350
        %v352 = vpop.f32.mrb[0].mxu0
        %v353 = vadd.f32 %v246, %v352
        %v354 = vpop.f32.mrb[0].mxu0
        %v355 = vadd.f32 %v251, %v354
        %v356 = vpop.f32.mrb[0].mxu0
        %v357 = vadd.f32 %v251, %v356
        %358 = vmatprep.mubr.bf16.mxu0 0
        %359 = vmatmul.mubr.bf16.gmra.mrb[0].mxu0 %v294
        %v360 = vpop.f32.mrb[0].mxu0
        %v361 = vadd.f32 %v256, %v360
        %v362 = vpop.f32.mrb[0].mxu0
        %v363 = vadd.f32 %v256, %v362
        %v364 = vpop.f32.mrb[0].mxu0
        %v365 = vadd.f32 %v261, %v364
        %v366 = vpop.f32.mrb[0].mxu0
        %v367 = vadd.f32 %v261, %v366
        %368 = vdwg.mxu0
        %v369 = vadd.f32 %v331, 3.0
        %v370 = vadd.f32 %v333, 3.0
        %v371 = vadd.f32 %v335, 3.0
        %v372 = vadd.f32 %v337, 3.0
        %v373 = vadd.f32 %v341, 3.0
        %v374 = vadd.f32 %v343, 3.0
        %v375 = vadd.f32 %v345, 3.0
        %v376 = vadd.f32 %v347, 3.0
        %v377 = vadd.f32 %v351, 3.0
        %v378 = vadd.f32 %v353, 3.0
        %v379 = vadd.f32 %v355, 3.0
        %v380 = vadd.f32 %v357, 3.0
        %v381 = vadd.f32 %v361, 3.0
        %v382 = vadd.f32 %v363, 3.0
        %v383 = vadd.f32 %v365, 3.0
        %v384 = vadd.f32 %v367, 3.0
        %v385 = vmax.f32 %v369, 0.0
        %v386 = vmax.f32 %v370, 0.0
        %v387 = vmax.f32 %v371, 0.0
        %v388 = vmax.f32 %v372, 0.0
        %v389 = vmax.f32 %v373, 0.0
        %v390 = vmax.f32 %v374, 0.0
        %v391 = vmax.f32 %v375, 0.0
        %v392 = vmax.f32 %v376, 0.0
        %v393 = vmax.f32 %v377, 0.0
        %v394 = vmax.f32 %v378, 0.0
        %v395 = vmax.f32 %v379, 0.0
        %v396 = vmax.f32 %v380, 0.0
        %v397 = vmax.f32 %v381, 0.0
        %v398 = vmax.f32 %v382, 0.0
        %v399 = vmax.f32 %v383, 0.0
        %v400 = vmax.f32 %v384, 0.0
        %v401 = vmin.f32 %v385, 6.0
        %v402 = vmin.f32 %v386, 6.0
        %v403 = vmin.f32 %v387, 6.0
        %v404 = vmin.f32 %v388, 6.0
        %v405 = vmin.f32 %v389, 6.0
        %v406 = vmin.f32 %v390, 6.0
        %v407 = vmin.f32 %v391, 6.0
        %v408 = vmin.f32 %v392, 6.0
        %v409 = vmin.f32 %v393, 6.0
        %v410 = vmin.f32 %v394, 6.0
        %v411 = vmin.f32 %v395, 6.0
        %v412 = vmin.f32 %v396, 6.0
        %v413 = vmin.f32 %v397, 6.0
        %v414 = vmin.f32 %v398, 6.0
        %v415 = vmin.f32 %v399, 6.0
        %v416 = vmin.f32 %v400, 6.0
        %v417 = vmul.f32 %v401, 0.16666667
        %v418 = vmul.f32 %v402, 0.16666667
        %v419 = vmul.f32 %v403, 0.16666667
        %v420 = vmul.f32 %v404, 0.16666667
        %v421 = vmul.f32 %v405, 0.16666667
        %v422 = vmul.f32 %v406, 0.16666667
        %v423 = vmul.f32 %v407, 0.16666667
        %v424 = vmul.f32 %v408, 0.16666667
        %v425 = vmul.f32 %v409, 0.16666667
        %v426 = vmul.f32 %v410, 0.16666667
        %v427 = vmul.f32 %v411, 0.16666667
        %v428 = vmul.f32 %v412, 0.16666667
        %v429 = vmul.f32 %v413, 0.16666667
        %v430 = vmul.f32 %v414, 0.16666667
        %v431 = vmul.f32 %v415, 0.16666667
        %v432 = vmul.f32 %v416, 0.16666667
        %v433 = vmul.f32 %v331, %v417
        %v434 = vmul.f32 %v333, %v418
        %v435 = vmul.f32 %v335, %v419
        %v436 = vmul.f32 %v337, %v420
        %v437 = vmul.f32 %v341, %v421
        %v438 = vmul.f32 %v343, %v422
        %v439 = vmul.f32 %v345, %v423
        %v440 = vmul.f32 %v347, %v424
        %v441 = vmul.f32 %v351, %v425
        %v442 = vmul.f32 %v353, %v426
        %v443 = vmul.f32 %v355, %v427
        %v444 = vmul.f32 %v357, %v428
        %v445 = vmul.f32 %v361, %v429
        %v446 = vmul.f32 %v363, %v430
        %v447 = vmul.f32 %v365, %v431
        %v448 = vmul.f32 %v367, %v432
        %v449 = vpack.c.bf16 %v435, %v433
        %v450 = vpack.c.bf16 %v436, %v434
        %v451 = vpack.c.bf16 %v439, %v437
        %v452 = vpack.c.bf16 %v440, %v438
        %v453 = vpack.c.bf16 %v443, %v441
        %v454 = vpack.c.bf16 %v444, %v442
        %v455 = vpack.c.bf16 %v447, %v445
        %v456 = vpack.c.bf16 %v448, %v446
        %v465 = vunpack.c.l.b16 %v449
        %v466 = vunpack.c.l.b16 %v450
        %v467 = vunpack.c.h.b16 %v449
        %v468 = vunpack.c.h.b16 %v450
        %v469 = vunpack.c.l.b16 %v451
        %v470 = vunpack.c.l.b16 %v452
        %v471 = vunpack.c.h.b16 %v451
        %v472 = vunpack.c.h.b16 %v452
        %v473 = vunpack.c.l.b16 %v453
        %v474 = vunpack.c.l.b16 %v454
        %v475 = vunpack.c.h.b16 %v453
        %v476 = vunpack.c.h.b16 %v454
        %v477 = vunpack.c.l.b16 %v455
        %v478 = vunpack.c.l.b16 %v456
        %v479 = vunpack.c.h.b16 %v455
        %v480 = vunpack.c.h.b16 %v456
        %v481 = vpack.c.b16 %v466, %v465
        %v482 = vpack.c.b16 %v468, %v467
        %v483 = vpack.c.b16 %v470, %v469
        %v484 = vpack.c.b16 %v472, %v471
        %v485 = vpack.c.b16 %v474, %v473
        %v486 = vpack.c.b16 %v476, %v475
        %v487 = vpack.c.b16 %v478, %v477
        %v488 = vpack.c.b16 %v480, %v479
        %497 = vst [vmem:[%s188] sm:$0xff] %v481
        %498 = vst [vmem:[%s188 + $0x8] sm:$0xff] %v482
        %499 = vst [vmem:[%s188 + $0x10] sm:$0xff] %v483
        %500 = vst [vmem:[%s188 + $0x18] sm:$0xff] %v484
        %501 = vst [vmem:[%s188 + $0x20] sm:$0xff] %v485
        %502 = vst [vmem:[%s188 + $0x28] sm:$0xff] %v486
        %503 = vst [vmem:[%s188 + $0x30] sm:$0xff] %v487
        %504 = vst [vmem:[%s188 + $0x38] sm:$0xff] %v488
        %s505 = sand.u32 %s109, 1
        %s506 = scalar_lea.sflag [#allocation3], %s505
        %s507 = sand.u32 %s109, 1
        %s508 = smul.addr %s507, 64
        %s509 = scalar_lea.vmem [#allocation2], %s508
        // Predicated region
        $region33: #{tpu_custom_call.1} parent=31 // pred_check
          %p510 = pneg %p119
        $region34: #{tpu_custom_call.1} parent=31 // pred_check_branch
          %512 = sbr.rel (%p510) target = $region36
        $region35: #{tpu_custom_call.1} parent=31 // pred_region
          %s513 = smul.u32 2, %s22
          %s515 = ssub.s32 1024, 1024
          %516 = vsyncadd %s506, %s515
          %s517 = smul.addr %s21, 16
          %s518 = sadd.s32 %s513, %s517
          %s519 = smul.addr %s518, 64
          %s520 = scalar_lea.hbm %s3, %s519
          %s521 = sshll.u32 %s509, 4
          %s522 = int_to_ptr.vmem [resolvable:$true] %s521
          %527 = dma.vmem_to_hbm [thread:$0]  %s522, 1024, %s520, %s506, 128, 128, 8
        $region36: #{tpu_custom_call.1} parent=31 // pred_fallthru
          _
      $region32: #{tpu_custom_call.1} parent=5 // pred_fallthru
        _
      %p528 = scmp.le.s32.totalorder 2, %s12
      // Predicated region
      $region37: #{tpu_custom_call.1} parent=5 // pred_check
        %p529 = pneg %p528
      $region38: #{tpu_custom_call.1} parent=5 // pred_check_branch
        %531 = sbr.rel (%p529) target = $region40
      $region39: #{tpu_custom_call.1} parent=5 // pred_region
        %s532 = ssub.s32 %s12, 2
        // Predicated region
        $region41: #{tpu_custom_call.1} parent=39 // pred_check
          %p533 = pneg %p125
        $region42: #{tpu_custom_call.1} parent=39 // pred_check_branch
          %535 = sbr.rel (%p533) target = $region44
        $region43: #{tpu_custom_call.1} parent=39 // pred_region
          %s536 = sand.u32 %s110, 1
          %s537 = scalar_lea.sflag [#allocation3], %s536
          %s538 = sand.u32 %s110, 1
          %s539 = smul.addr %s538, 64
          %s540 = scalar_lea.vmem [#allocation2], %s539
          %541 = dma.done %s537, 1024
        $region44: #{tpu_custom_call.1} parent=39 // pred_fallthru
          _
      $region40: #{tpu_custom_call.1} parent=5 // pred_fallthru
        _
    $region6: #{tpu_custom_call.1} parent=1 // loop_footer
      %s16 = sadd.s32 1, %s12
    $region7: #{tpu_custom_call.1} parent=1 // loop_footer_branch
      %11 = sbr.rel target = $region3
    $region8: #{tpu_custom_call.1} parent=1 // loop_exit
      _
    %542 = vsyncpa [#allocation3], 1
    %s543 = scalar_lea.sflag [#allocation3], 1
    %544 = vsyncpa %s543, 1

</llo_original>
